<compile_context>
chip_gen: v6e
topology: v6e:2x2x1
jax: 0.10.0
libtpu: 0.0.40
codegen_flags: <defaults>
</compile_context>

<pallas_src>
import math
from functools import partial

import jax
import jax.numpy as jnp
from jax.experimental import pallas as pl
from jax.experimental.pallas import tpu as pltpu

_EPS = 1e-5


def _divisors(n):
    return [d for d in range(1, n + 1) if n % d == 0]


def _sublane_multiple(dtype):
    # f32 -> 8 sublanes, bf16 -> 16, int8/fp8 -> 32 (packed layouts).
    return {4: 8, 2: 16, 1: 32}.get(jnp.dtype(dtype).itemsize, 8)


def _hw_config():
    """Per-generation sizing: (x-block budget, base vmem limit, phys vmem, #TC guess)."""
    kind = ""
    try:
        kind = (jax.devices()[0].device_kind or "").lower()
    except Exception:
        pass
    vmem_phys = None
    try:
        info = pltpu.get_tpu_info()
        vmem_phys = getattr(info, "vmem_capacity_bytes", None)
    except Exception:
        vmem_phys = None
    if vmem_phys is None:
        vmem_phys = (64 << 20) if "7" in kind else (128 << 20)
    if vmem_phys <= (64 << 20):
        # v7x-class: 64 MiB physical VMEM per TensorCore, 2 TCs per chip.
        return (5 << 20), (40 << 20), vmem_phys, 2
    # v5e / v6e class: 128 MiB physical VMEM, 1 TensorCore (v4/v5p: 2).
    cores = 2 if ("v4" in kind or "v5p" in kind) else 1
    return (12 << 20), (72 << 20), vmem_phys, cores


def _pick_tile(candidates, bytes_per_row, budget, total, min_blocks=1):
    """Largest candidate whose block fits the budget; prefer >=min_blocks grid blocks."""
    candidates = sorted(candidates)
    fitting = [t for t in candidates if t * bytes_per_row <= budget] or candidates[:1]
    if min_blocks > 1:
        pref = [t for t in fitting if total // t >= min_blocks]
        if pref:
            return pref[-1]
    return fitting[-1]


def _vmem_limit(block_bytes, base, phys):
    # 2x double-buffering on every pipelined block + slack; clamp below physical VMEM.
    need = 2 * int(sum(block_bytes)) + (4 << 20)
    cap = max(phys - (16 << 20), 16 << 20)
    return int(min(max(base, need), cap))


# --------------------------- pass 1: BN batch stats ---------------------------
def _bn_stats_kernel(x_ref, mean_ref, rstd_ref, *, inv_count):
    # grid = (channel_tiles, N); N is the reduction axis (last, "arbitrary").
    # x_ref: (1, tcb, L).  mean_ref / rstd_ref: (1, tcb, 1) resident accumulators
    # (sum and sum-of-squares while accumulating; mean / rstd after finalize).
    n = pl.program_id(1)

    @pl.when(n == 0)
    def _():
        mean_ref[...] = jnp.zeros_like(mean_ref)
        rstd_ref[...] = jnp.zeros_like(rstd_ref)

    x = x_ref[...].astype(jnp.float32)
    mean_ref[...] += jnp.sum(x, axis=-1, keepdims=True)
    rstd_ref[...] += jnp.sum(x * x, axis=-1, keepdims=True)

    @pl.when(n == pl.num_programs(1) - 1)
    def _():
        mean = mean_ref[...] * inv_count
        var = jnp.maximum(rstd_ref[...] * inv_count - mean * mean, 0.0)  # biased var
        mean_ref[...] = mean
        rstd_ref[...] = jax.lax.rsqrt(var + _EPS)


# ----------------------- pass 2: fused IN/BN normalize ------------------------
def _ibn_norm_kernel(x_ref, side_ref, o_ref, *, half, tc, inv_l, pure, single_c_block):
    # grid = (N, C // tc), both parallel.
    # x_ref / o_ref: (1, tc, L).
    # side_ref: (4, C, 1) f32, VMEM-resident (constant index_map => fetched once):
    #   rows = [bn_mean, bn_rstd, gamma, beta].
    c_blk = pl.program_id(1)
    if single_c_block:
        csl = slice(None)                       # static full-width slice
    else:
        c0 = pl.multiple_of(c_blk * tc, tc)
        csl = pl.ds(c0, tc)

    gamma = side_ref[2, csl, :]                 # (tc, 1)
    beta = side_ref[3, csl, :]
    x = x_ref[...].astype(jnp.float32)          # (1, tc, L)

    def write(mean, rstd):
        scale = rstd * gamma
        shift = beta - mean * scale
        o_ref[...] = (x * scale + shift).astype(o_ref.dtype)

    def instance_stats():
        s = jnp.sum(x, axis=-1, keepdims=True)
        ss = jnp.sum(x * x, axis=-1, keepdims=True)
        m = s * inv_l
        v = jnp.maximum(ss * inv_l - m * m, 0.0)
        return m, jax.lax.rsqrt(v + _EPS)

    if pure:
        # Every channel tile is entirely IN or entirely BN: skip the unused work.
        @pl.when(c_blk * tc < half)
        def _():
            m, r = instance_stats()
            write(m, r)

        @pl.when(c_blk * tc >= half)
        def _():
            write(side_ref[0, csl, :], side_ref[1, csl, :])
    else:
        m, r = instance_stats()
        ch = jax.lax.broadcasted_iota(jnp.int32, (1, tc, 1), 1) + c_blk * tc
        is_in = ch < half
        mean = jnp.where(is_in, m, side_ref[0, csl, :])
        rstd = jnp.where(is_in, r, side_ref[1, csl, :])
        write(mean, rstd)


def ibn_forward(x, in_weight, in_bias, bn_weight, bn_bias, half):
    """x: (N, C, H, W) NCHW; same forward semantics as the PyTorch IBN module."""
    N, C, H, W = x.shape
    assert 0 < half < C, "IBN needs both an IN half and a BN half"
    L = H * W
    itemsize = jnp.dtype(x.dtype).itemsize
    sub = _sublane_multiple(x.dtype)
    row_bytes = L * itemsize

    budget, base_limit, vmem_phys, n_cores = _hw_config()

    x3 = x.reshape(N, C, L)  # contiguous collapse of spatial dims -> free
    # NOTE: when L is small and not a multiple of 128 (e.g. 7*7), zero-padding the lane
    # dim would make stores lane-dense, but costs an extra HBM copy of x; not done here.

    # ---------------- pass 1: BN per-channel (mean, rstd) over (N, H, W) ----------------
    # Read only channels [c_start, C): c_start = half rounded down to a sublane-aligned
    # channel, so at most (sub-1) extra IN channels are touched (their stats are unused).
    c_start = (half // sub) * sub
    stat_cands = []
    if c_start > 0:
        stat_cands = [d for d in _divisors(C - c_start)
                      if d % sub == 0 and c_start % d == 0]
    if not stat_cands:
        c_start = 0
        stat_cands = [d for d in _divisors(C) if d % sub == 0] or [C]
    c_cover = C - c_start

    tcb = _pick_tile(stat_cands, row_bytes, budget, c_cover,
                     min_blocks=2 if n_cores >= 2 else 1)
    c_off_blk = c_start // tcb
    # TODO(synk): add an L-tiling fallback (extra reduction axis) for extremely large
    # H*W where even the minimum channel tile exceeds the VMEM budget.

    limit1 = _vmem_limit([tcb * row_bytes, 2 * tcb * 4], base_limit, vmem_phys)
    bn_mean, bn_rstd = pl.pallas_call(
        partial(_bn_stats_kernel, inv_count=1.0 / float(N * L)),
        out_shape=(jax.ShapeDtypeStruct((1, c_cover, 1), jnp.float32),
                   jax.ShapeDtypeStruct((1, c_cover, 1), jnp.float32)),
        grid=(c_cover // tcb, N),
        in_specs=[pl.BlockSpec((1, tcb, L), lambda c, n: (n, c + c_off_blk, 0))],
        out_specs=(pl.BlockSpec((1, tcb, 1), lambda c, n: (0, c, 0)),
                   pl.BlockSpec((1, tcb, 1), lambda c, n: (0, c, 0))),
        compiler_params=pltpu.CompilerParams(
            dimension_semantics=("parallel", "arbitrary"),
            vmem_limit_bytes=limit1),
    )(x3)

    if c_cover < C:
        # Pad stats to full C (tiny). Entries below `half` are never selected in pass 2.
        bn_mean = jnp.concatenate([jnp.zeros((1, c_start, 1), jnp.float32), bn_mean], 1)
        bn_rstd = jnp.concatenate([jnp.ones((1, c_start, 1), jnp.float32), bn_rstd], 1)

    gamma = jnp.concatenate([in_weight, bn_weight]).astype(jnp.float32).reshape(1, C, 1)
    beta = jnp.concatenate([in_bias, bn_bias]).astype(jnp.float32).reshape(1, C, 1)
    # One VMEM-resident side table: rows = [bn_mean, bn_rstd, gamma, beta].
    side = jnp.concatenate([bn_mean, bn_rstd, gamma, beta], axis=0)  # (4, C, 1) f32

    # -------- pass 2: fused IN/BN normalize over the full channel width --------
    norm_cands = [d for d in _divisors(C) if d % sub == 0] or [C]
    min_blocks = 2 if (n_cores >= 2 and N == 1) else 1   # N axis already feeds megacore
    tc = _pick_tile(norm_cands, 2 * row_bytes, budget, C, min_blocks=min_blocks)
    n_c_blocks = C // tc
    pure = (half % tc == 0)   # every channel tile is purely IN or purely BN

    side_bytes = 4 * ((C + sub - 1) // sub) * sub * 128 * 4   # padded-layout estimate
    limit2 = _vmem_limit([tc * row_bytes, tc * row_bytes, side_bytes],
                         base_limit, vmem_phys)

    y = pl.pallas_call(
        partial(_ibn_norm_kernel, half=half, tc=tc, inv_l=1.0 / float(L),
                pure=pure, single_c_block=(n_c_blocks == 1)),
        out_shape=jax.ShapeDtypeStruct((N, C, L), x.dtype),
        grid=(N, n_c_blocks),
        in_specs=[
            pl.BlockSpec((1, tc, L), lambda n, c: (n, c, 0)),
            pl.BlockSpec((4, C, 1), lambda n, c: (0, 0, 0)),  # resident, fetched once
        ],
        out_specs=pl.BlockSpec((1, tc, L), lambda n, c: (n, c, 0)),
        compiler_params=pltpu.CompilerParams(
            dimension_semantics=("parallel", "parallel"),
            vmem_limit_bytes=limit2),
    )(x3, side)

    return y.reshape(N, C, H, W)


def ibn_reference(x, in_w, in_b, bn_w, bn_b, half):
    """Pure-JAX reference matching the PyTorch forward (training-mode BN)."""
    x = x.astype(jnp.float32)
    x1, x2 = x[:, :half], x[:, half:]
    m1 = jnp.mean(x1, axis=(2, 3), keepdims=True)
    v1 = jnp.var(x1, axis=(2, 3), keepdims=True)
    y1 = (x1 - m1) / jnp.sqrt(v1 + _EPS)
    y1 = y1 * in_w.reshape(1, -1, 1, 1) + in_b.reshape(1, -1, 1, 1)
    m2 = jnp.mean(x2, axis=(0, 2, 3), keepdims=True)
    v2 = jnp.var(x2, axis=(0, 2, 3), keepdims=True)
    y2 = (x2 - m2) / jnp.sqrt(v2 + _EPS)
    y2 = y2 * bn_w.reshape(1, -1, 1, 1) + bn_b.reshape(1, -1, 1, 1)
    return jnp.concatenate([y1, y2], axis=1)


if __name__ == "__main__":
    # Small shapes consistent with IBN(planes=4, ratio=0.5) on NCHW input.
    N, C, H, W = 2, 4, 16, 16
    planes, ratio = C, 0.5
    half = int(planes * ratio)   # IN channels
    rest = planes - half         # BN channels

    key = jax.random.PRNGKey(0)
    kx, k1, k2, k3, k4 = jax.random.split(key, 5)
    x = jax.random.normal(kx, (N, C, H, W), dtype=jnp.float32)

    # Non-trivial affine params (PyTorch defaults would be ones/zeros).
    in_weight = 1.0 + 0.1 * jax.random.normal(k1, (half,), dtype=jnp.float32)
    in_bias = 0.1 * jax.random.normal(k2, (half,), dtype=jnp.float32)
    bn_weight = 1.0 + 0.1 * jax.random.normal(k3, (rest,), dtype=jnp.float32)
    bn_bias = 0.1 * jax.random.normal(k4, (rest,), dtype=jnp.float32)

    out = ibn_forward(x, in_weight, in_bias, bn_weight, bn_bias, half)
    out = jax.block_until_ready(out)

    ref = ibn_reference(x, in_weight, in_bias, bn_weight, bn_bias, half)
    assert out.shape == (N, C, H, W)
    assert jnp.allclose(out, ref, atol=1e-4, rtol=1e-4), "mismatch vs reference"

    # TODO(synk): BatchNorm running_mean/running_var buffer updates (training side
    # effect, not part of the returned tensor) are not modeled.
    print("KERNEL_OK")
</pallas_src>

<mosaic_0001>
module attributes {stable_mosaic.version = 11 : i64} {
  func.func @_bn_stats_kernel(%arg0: i32, %arg1: i32, %arg2: memref<1x4x256xf32, #tpu.memory_space<vmem>>, %arg3: memref<1x4x1xf32, #tpu.memory_space<vmem>>, %arg4: memref<1x4x1xf32, #tpu.memory_space<vmem>>) attributes {dimension_semantics = [#tpu.dimension_semantics<parallel>, #tpu.dimension_semantics<arbitrary>], iteration_bounds = array<i64: 1, 2>, scalar_prefetch = 0 : i64, scratch_operands = 0 : i64, tpu.core_type = #tpu.core_type<tc>, window_params = [{transform_indices = @transform_0, window_bounds = array<i64: 1, 4, 256>}, {transform_indices = @transform_1, window_bounds = array<i64: 1, 4, 1>}, {transform_indices = @transform_2, window_bounds = array<i64: 1, 4, 1>}]} {
    %c0_i32 = arith.constant 0 : i32
    %0 = arith.cmpi eq, %arg1, %c0_i32 : i32
    %1 = arith.extui %0 : i1 to i32
    %c0_i32_0 = arith.constant 0 : i32
    %2 = arith.cmpi ne, %1, %c0_i32_0 : i32
    scf.if %2 {
      %cst_17 = arith.constant 0.000000e+00 : f32
      %18 = vector.broadcast %cst_17 : f32 to vector<1x4x1xf32>
      %c0_18 = arith.constant 0 : index
      %c0_19 = arith.constant 0 : index
      %c0_20 = arith.constant 0 : index
      %19 = vector.load %arg3[%c0_18, %c0_19, %c0_20] : memref<1x4x1xf32, #tpu.memory_space<vmem>>, vector<1x4x1xf32>
      tpu.vector_store %arg3[%c0_18, %c0_19, %c0_20], %18 {strides = array<i32>} : memref<1x4x1xf32, #tpu.memory_space<vmem>>, vector<1x4x1xf32>,
      %cst_21 = arith.constant 0.000000e+00 : f32
      %20 = vector.broadcast %cst_21 : f32 to vector<1x4x1xf32>
      %c0_22 = arith.constant 0 : index
      %c0_23 = arith.constant 0 : index
      %c0_24 = arith.constant 0 : index
      %21 = vector.load %arg4[%c0_22, %c0_23, %c0_24] : memref<1x4x1xf32, #tpu.memory_space<vmem>>, vector<1x4x1xf32>
      tpu.vector_store %arg4[%c0_22, %c0_23, %c0_24], %20 {strides = array<i32>} : memref<1x4x1xf32, #tpu.memory_space<vmem>>, vector<1x4x1xf32>,
    } else {
    }
    %c0 = arith.constant 0 : index
    %c0_1 = arith.constant 0 : index
    %c0_2 = arith.constant 0 : index
    %3 = vector.load %arg2[%c0, %c0_1, %c0_2] : memref<1x4x256xf32, #tpu.memory_space<vmem>>, vector<1x4x256xf32>
    %c0_3 = arith.constant 0 : index
    %c0_4 = arith.constant 0 : index
    %c0_5 = arith.constant 0 : index
    %4 = vector.load %arg3[%c0_3, %c0_4, %c0_5] : memref<1x4x1xf32, #tpu.memory_space<vmem>>, vector<1x4x1xf32>
    %cst = arith.constant dense<0.000000e+00> : vector<1x4xf32>
    %5 = vector.multi_reduction <add>, %3, %cst [2] : vector<1x4x256xf32> to vector<1x4xf32>
    %6 = vector.shape_cast %5 : vector<1x4xf32> to vector<1x4x1xf32>
    %7 = arith.addf %4, %6 : vector<1x4x1xf32>
    %c0_6 = arith.constant 0 : index
    %c0_7 = arith.constant 0 : index
    %c0_8 = arith.constant 0 : index
    %8 = vector.load %arg3[%c0_6, %c0_7, %c0_8] : memref<1x4x1xf32, #tpu.memory_space<vmem>>, vector<1x4x1xf32>
    tpu.vector_store %arg3[%c0_6, %c0_7, %c0_8], %7 {strides = array<i32>} : memref<1x4x1xf32, #tpu.memory_space<vmem>>, vector<1x4x1xf32>,
    %c0_9 = arith.constant 0 : index
    %c0_10 = arith.constant 0 : index
    %c0_11 = arith.constant 0 : index
    %9 = vector.load %arg4[%c0_9, %c0_10, %c0_11] : memref<1x4x1xf32, #tpu.memory_space<vmem>>, vector<1x4x1xf32>
    %10 = arith.mulf %3, %3 : vector<1x4x256xf32>
    %cst_12 = arith.constant dense<0.000000e+00> : vector<1x4xf32>
    %11 = vector.multi_reduction <add>, %10, %cst_12 [2] : vector<1x4x256xf32> to vector<1x4xf32>
    %12 = vector.shape_cast %11 : vector<1x4xf32> to vector<1x4x1xf32>
    %13 = arith.addf %9, %12 : vector<1x4x1xf32>
    %c0_13 = arith.constant 0 : index
    %c0_14 = arith.constant 0 : index
    %c0_15 = arith.constant 0 : index
    %14 = vector.load %arg4[%c0_13, %c0_14, %c0_15] : memref<1x4x1xf32, #tpu.memory_space<vmem>>, vector<1x4x1xf32>
    tpu.vector_store %arg4[%c0_13, %c0_14, %c0_15], %13 {strides = array<i32>} : memref<1x4x1xf32, #tpu.memory_space<vmem>>, vector<1x4x1xf32>,
    %c1_i32 = arith.constant 1 : i32
    %15 = arith.cmpi eq, %arg1, %c1_i32 : i32
    %16 = arith.extui %15 : i1 to i32
    %c0_i32_16 = arith.constant 0 : i32
    %17 = arith.cmpi ne, %16, %c0_i32_16 : i32
    scf.if %17 {
      %c0_17 = arith.constant 0 : index
      %c0_18 = arith.constant 0 : index
      %c0_19 = arith.constant 0 : index
      %18 = vector.load %arg3[%c0_17, %c0_18, %c0_19] : memref<1x4x1xf32, #tpu.memory_space<vmem>>, vector<1x4x1xf32>
      %cst_20 = arith.constant 0.001953125 : f32
      %19 = vector.broadcast %cst_20 : f32 to vector<1x4x1xf32>
      %20 = arith.mulf %18, %19 : vector<1x4x1xf32>
      %c0_21 = arith.constant 0 : index
      %c0_22 = arith.constant 0 : index
      %c0_23 = arith.constant 0 : index
      %21 = vector.load %arg4[%c0_21, %c0_22, %c0_23] : memref<1x4x1xf32, #tpu.memory_space<vmem>>, vector<1x4x1xf32>
      %cst_24 = arith.constant 0.001953125 : f32
      %22 = vector.broadcast %cst_24 : f32 to vector<1x4x1xf32>
      %23 = arith.mulf %21, %22 : vector<1x4x1xf32>
      %24 = arith.mulf %20, %20 : vector<1x4x1xf32>
      %25 = arith.subf %23, %24 : vector<1x4x1xf32>
      %cst_25 = arith.constant 0.000000e+00 : f32
      %26 = vector.broadcast %cst_25 : f32 to vector<1x4x1xf32>
      %27 = arith.maximumf %25, %26 : vector<1x4x1xf32>
      %c0_26 = arith.constant 0 : index
      %c0_27 = arith.constant 0 : index
      %c0_28 = arith.constant 0 : index
      %28 = vector.load %arg3[%c0_26, %c0_27, %c0_28] : memref<1x4x1xf32, #tpu.memory_space<vmem>>, vector<1x4x1xf32>
      tpu.vector_store %arg3[%c0_26, %c0_27, %c0_28], %20 {strides = array<i32>} : memref<1x4x1xf32, #tpu.memory_space<vmem>>, vector<1x4x1xf32>,
      %cst_29 = arith.constant 9.99999974E-6 : f32
      %29 = vector.broadcast %cst_29 : f32 to vector<1x4x1xf32>
      %30 = arith.addf %27, %29 : vector<1x4x1xf32>
      %31 = math.rsqrt %30 : vector<1x4x1xf32>
      %c0_30 = arith.constant 0 : index
      %c0_31 = arith.constant 0 : index
      %c0_32 = arith.constant 0 : index
      %32 = vector.load %arg4[%c0_30, %c0_31, %c0_32] : memref<1x4x1xf32, #tpu.memory_space<vmem>>, vector<1x4x1xf32>
      tpu.vector_store %arg4[%c0_30, %c0_31, %c0_32], %31 {strides = array<i32>} : memref<1x4x1xf32, #tpu.memory_space<vmem>>, vector<1x4x1xf32>,
    } else {
    }
    return
  }
  func.func @transform_0(%arg0: i32, %arg1: i32) -> (i32, i32, i32) {
    %c0_i32 = arith.constant 0 : i32
    %0 = arith.addi %arg0, %c0_i32 : i32
    %c0_i32_0 = arith.constant 0 : i32
    %c0_i32_1 = arith.constant 0 : i32
    return %arg1, %0, %c0_i32_0 : i32, i32, i32
  }
  func.func @transform_1(%arg0: i32, %arg1: i32) -> (i32, i32, i32) {
    %c0_i32 = arith.constant 0 : i32
    %c0_i32_0 = arith.constant 0 : i32
    %c0_i32_1 = arith.constant 0 : i32
    return %c0_i32, %arg0, %c0_i32_0 : i32, i32, i32
  }
  func.func @transform_2(%arg0: i32, %arg1: i32) -> (i32, i32, i32) {
    %c0_i32 = arith.constant 0 : i32
    %c0_i32_0 = arith.constant 0 : i32
    %c0_i32_1 = arith.constant 0 : i32
    return %c0_i32, %arg0, %c0_i32_0 : i32, i32, i32
  }
}

</mosaic_0001>

<llo_original>
// kernel: tpu_custom_call.1
$region0: #{tpu_custom_call.1}
  #allocation0 [shape = 'u32[]', space=smem, size = 0x4, offset = 0x4, fixed_abs, tag = 'smem constant byte address 0x4 - core index']
  #allocation1 [shape = 'u32[144,128]{1,0:T(1,128)}', space=vmem, size = 0x12000, scoped, tag = 'internal scratch']
  %s0 = inlined_call_operand.hbm [shape: f32[2,4,256], index: 0, kind: input, shape index: {}]
  %s1 = inlined_call_operand.vmem [shape: f32[1,4,1], index: 1, kind: output, shape index: {0}]
  %s2 = inlined_call_operand.vmem [shape: f32[1,4,1], index: 2, kind: output, shape index: {1}]
  %3 = xla_tuple %s1, %s2
  %s4 = sld [smem:[#allocation0]]
  $region57: #{tpu_custom_call.1} parent=0
    _
  %s6 = ssub.s32 1, %s4
  %s7 = scalar_select 0, %s6, %s4
  $region1: #{tpu_custom_call.1} parent=0
    #allocation2 [shape = 'u8[8192]{0}', space=vmem, size = 0x2000, scoped, tag = 'input window, operand 0']
    #allocation3 [shape = 's32[2]{0}', space=sflag, size = 0x8, scoped, tag = 'scoped memory for tpu_custom_call.1']
    %8 = vsyncpa [#allocation3], 0
    %s9 = scalar_lea.sflag [#allocation3], 1
    %10 = vsyncpa %s9, 0
    loop: start=0, step=1, limit=4
    $region2: #{tpu_custom_call.1} parent=1 // loop_pre_header
      _
    $region3: #{tpu_custom_call.1} parent=1 // loop_header
      %s12 = sphi 0, %s16
      %p13 = scmp.ge.s32.totalorder %s12, 4
      %s19 = sphi 0, %s31
      %s20 = sphi 0, %s27
      %s21 = sphi 0, %s19
      %s22 = sphi 0, %s20
      %s23 = sphi 0, %s21
      %s24 = sphi 0, %s22
      %s36 = sphi 0, %s38
      %s39 = sphi 0, %s36
      %s40 = sphi 0, %s39
      %s56 = sphi 0, %s40
      %s62 = sphi 0, %s64
      %s65 = sphi 0, %s62
      %s66 = sphi 0, %s65
      %s82 = sphi 0, %s66
      %s88 = sphi 0, %s90
      %s91 = sphi 0, %s88
      %s92 = sphi 0, %s91
      %s108 = sphi 0, %s92
    $region4: #{tpu_custom_call.1} parent=1 // loop_header_branch
      %15 = sbr.rel (%p13) target = $region8
    $region5: #{tpu_custom_call.1} parent=1 // loop_body
      %s17 = ssub.s32 %s12, 1
      %s18 = ssub.s32 %s12, 2
      %s25 = sadd.s32 1, %s20
      %p26 = scmp.ge.s32.totalorder %s25, 2
      %s27 = scalar_select %p26, 0, %s25
      %s28 = sadd.s32 1, %s19
      %s29 = scalar_select %p26, %s28, %s19
      %p30 = scmp.ge.s32.totalorder %s29, 1
      %s31 = scalar_select %p30, 0, %s29
      %s32 = ssub.s32 %s20, %s27
      %s33 = ssub.s32 %s19, %s31
      %s34 = sor.u32 %s32, %s33
      %p35 = scmp.eq.s32.totalorder %s34, 0
      %s37 = sadd.s32 %s36, 1
      %s38 = scalar_select %p35, %s36, %s37
      %p41 = pneg %p35
      %p42 = scmp.eq.s32.totalorder %s12, 1
      %p43 = por %p41, %p42
      %p44 = scmp.ne.s32.totalorder %s36, %s39
      %p45 = scmp.eq.s32.totalorder %s12, 0
      %p46 = por %p44, %p45
      %p47 = scmp.ne.s32.totalorder %s36, %s39
      %p48 = scmp.eq.s32.totalorder %s17, 1
      %p49 = por %p47, %p48
      %p50 = scmp.ne.s32.totalorder %s39, %s40
      %p51 = scmp.eq.s32.totalorder %s17, 0
      %p52 = por %p50, %p51
      %p53 = scmp.ne.s32.totalorder %s39, %s40
      %p54 = scmp.eq.s32.totalorder %s18, 1
      %p55 = por %p53, %p54
      %p57 = scmp.ne.s32.totalorder %s40, %s56
      %p58 = scmp.eq.s32.totalorder %s18, 0
      %p59 = por %p57, %p58
      %s60 = ssub.s32 %s19, %s31
      %p61 = scmp.eq.s32.totalorder %s60, 0
      %s63 = sadd.s32 %s62, 1
      %s64 = scalar_select %p61, %s62, %s63
      %p67 = pneg %p61
      %p68 = scmp.eq.s32.totalorder %s12, 1
      %p69 = por %p67, %p68
      %p70 = scmp.ne.s32.totalorder %s62, %s65
      %p71 = scmp.eq.s32.totalorder %s12, 0
      %p72 = por %p70, %p71
      %p73 = scmp.ne.s32.totalorder %s62, %s65
      %p74 = scmp.eq.s32.totalorder %s17, 1
      %p75 = por %p73, %p74
      %p76 = scmp.ne.s32.totalorder %s65, %s66
      %p77 = scmp.eq.s32.totalorder %s17, 0
      %p78 = por %p76, %p77
      %p79 = scmp.ne.s32.totalorder %s65, %s66
      %p80 = scmp.eq.s32.totalorder %s18, 1
      %p81 = por %p79, %p80
      %p83 = scmp.ne.s32.totalorder %s66, %s82
      %p84 = scmp.eq.s32.totalorder %s18, 0
      %p85 = por %p83, %p84
      %s86 = ssub.s32 %s19, %s31
      %p87 = scmp.eq.s32.totalorder %s86, 0
      %s89 = sadd.s32 %s88, 1
      %s90 = scalar_select %p87, %s88, %s89
      %p93 = pneg %p87
      %p94 = scmp.eq.s32.totalorder %s12, 1
      %p95 = por %p93, %p94
      %p96 = scmp.ne.s32.totalorder %s88, %s91
      %p97 = scmp.eq.s32.totalorder %s12, 0
      %p98 = por %p96, %p97
      %p99 = scmp.ne.s32.totalorder %s88, %s91
      %p100 = scmp.eq.s32.totalorder %s17, 1
      %p101 = por %p99, %p100
      %p102 = scmp.ne.s32.totalorder %s91, %s92
      %p103 = scmp.eq.s32.totalorder %s17, 0
      %p104 = por %p102, %p103
      %p105 = scmp.ne.s32.totalorder %s91, %s92
      %p106 = scmp.eq.s32.totalorder %s18, 1
      %p107 = por %p105, %p106
      %p109 = scmp.ne.s32.totalorder %s92, %s108
      %p110 = scmp.eq.s32.totalorder %s18, 0
      %p111 = por %p109, %p110
      %p112 = scmp.le.s32.totalorder 1, %s12
      %p113 = scmp.lt.s32.totalorder %s12, 3
      %p114 = pnand %p112, %p113
      %p115 = pneg %p114
      // Predicated region
      $region9: #{tpu_custom_call.1} parent=5 // pred_check
        _
      $region10: #{tpu_custom_call.1} parent=5 // pred_check_branch
        %117 = sbr.rel (%p114) target = $region12
      $region11: #{tpu_custom_call.1} parent=5 // pred_region
        %s118 = ssub.s32 %s12, 1
      $region12: #{tpu_custom_call.1} parent=5 // pred_fallthru
        _
      %p119 = scmp.lt.s32.totalorder %s12, 2
      // Predicated region
      $region13: #{tpu_custom_call.1} parent=5 // pred_check
        %p120 = pneg %p119
      $region14: #{tpu_custom_call.1} parent=5 // pred_check_branch
        %122 = sbr.rel (%p120) target = $region16
      $region15: #{tpu_custom_call.1} parent=5 // pred_region
        // Predicated region
        $region17: #{tpu_custom_call.1} parent=15 // pred_check
          %p123 = pneg %p46
        $region18: #{tpu_custom_call.1} parent=15 // pred_check_branch
          %125 = sbr.rel (%p123) target = $region20
        $region19: #{tpu_custom_call.1} parent=15 // pred_region
          %s126 = sand.u32 %s36, 1
          %s127 = scalar_lea.sflag [#allocation3], %s126
          %s128 = sand.u32 %s36, 1
          %s129 = smul.addr %s128, 8
          %s130 = scalar_lea.vmem [#allocation2], %s129
          %s132 = ssub.s32 128, 128
          %133 = vsyncadd %s127, %s132
          %s134 = smul.addr %s19, 2
          %s135 = smul.addr %s20, 2
          %s136 = sadd.s32 %s134, %s135
          %s137 = smul.addr %s136, 64
          %s138 = scalar_lea.hbm %s0, %s137
          %s140 = sshll.u32 %s130, 4
          %s141 = int_to_ptr.vmem [resolvable:$true] %s140
          %143 = dma.hbm_to_vmem [thread:$0]  %s138, 128, %s141, %s127
        $region20: #{tpu_custom_call.1} parent=15 // pred_fallthru
          _
      $region16: #{tpu_custom_call.1} parent=5 // pred_fallthru
        _
      %p144 = scmp.le.s32.totalorder 1, %s12
      %p145 = scmp.lt.s32.totalorder %s12, 3
      %p146 = pnand %p144, %p145
      %p147 = pneg %p146
      // Predicated region
      $region21: #{tpu_custom_call.1} parent=5 // pred_check
        _
      $region22: #{tpu_custom_call.1} parent=5 // pred_check_branch
        %149 = sbr.rel (%p146) target = $region24
      $region23: #{tpu_custom_call.1} parent=5 // pred_region
        %s150 = ssub.s32 %s12, 1
        %s151 = sand.u32 %s39, 1
        %s152 = scalar_lea.sflag [#allocation3], %s151
        %s153 = sand.u32 %s39, 1
        %s154 = smul.addr %s153, 8
        %s155 = scalar_lea.vmem [#allocation2], %s154
        // Predicated region
        $region25: #{tpu_custom_call.1} parent=23 // pred_check
          %p156 = pneg %p52
        $region26: #{tpu_custom_call.1} parent=23 // pred_check_branch
          %158 = sbr.rel (%p156) target = $region28
        $region27: #{tpu_custom_call.1} parent=23 // pred_region
          %159 = dma.done %s152, 128
        $region28: #{tpu_custom_call.1} parent=23 // pred_fallthru
          _
        %s160 = sand.u32 %s39, 1
        %s161 = scalar_lea.sflag [#allocation3], %s160
        %s162 = sand.u32 %s39, 1
        %s163 = smul.addr %s162, 8
        %s164 = scalar_lea.vmem [#allocation2], %s163
        %p165 = pneg %p52
        %p166 = pneg %p49
        %p167 = pneg %p78
        %p168 = pneg %p75
        %p169 = scmp.lt.s32.totalorder %s21, 0
        %s170 = scalar_select %p169, %s21, 0
        %s171 = smul.addr %s170, 4
        %s172 = scalar_lea.vmem %s1, %s171
        %p173 = pneg %p104
        %p174 = pneg %p101
        %p175 = scmp.lt.s32.totalorder %s21, 0
        %s176 = scalar_select %p175, %s21, 0
        %s177 = smul.addr %s176, 4
        %s178 = scalar_lea.vmem %s2, %s177
        %p179 = scmp.lt.s32.totalorder %s21, 0
        %s180 = scalar_select %p179, %s21, 0
        %s181 = smul.addr %s180, 4
        %s182 = scalar_lea.vmem %s1, %s181
        %p183 = scmp.lt.s32.totalorder %s21, 0
        %s184 = scalar_select %p183, %s21, 0
        %s185 = smul.addr %s184, 4
        %s186 = scalar_lea.vmem %s2, %s185
        %p187 = scmp.eq.s32.totalorder %s22, 0
        // Predicated region
        $region29: #{tpu_custom_call.1} parent=23 // pred_check
          %p188 = pneg %p187
        $region30: #{tpu_custom_call.1} parent=23 // pred_check_branch
          %190 = sbr.rel (%p188) target = $region32
        $region31: #{tpu_custom_call.1} parent=23 // pred_region
          %vm191 = vcmask 3072
          %192 = vst.msk [vmem:[%s182] sm:$0xf] %vm191, 0.0
          %193 = vst.msk [vmem:[%s186] sm:$0xf] %vm191, 0.0
        $region32: #{tpu_custom_call.1} parent=23 // pred_fallthru
          _
        %v194 = vld [vmem:[%s155] sm:$0xff]
        %v195 = vld [vmem:[%s182] sm:$0xf]
        %v197 = vcombine.high %v194, %v194
        %vm199 = vcmask 1043456
        %v200 = vsel %vm199, %v194, 0.0
        %v201 = vsel %vm199, %v197, 0.0
        %v202 = vadd.f32 %v200, %v201
        %203 = vadd.xlane.f32.xlu0 %v202
        %v204 = vpop.xlane.xlu0 %203
        %v205 = vadd.f32 %v195, %v204
        %vm206 = vcmask 3072
        %207 = vst.msk [vmem:[%s182] sm:$0xf] %vm206, %v205
        %v208 = vld [vmem:[%s186] sm:$0xf]
        %v209 = vmul.f32 %v194, %v194
        %v211 = vcombine.high %v209, %v209
        %v213 = vsel %vm199, %v209, 0.0
        %v214 = vsel %vm199, %v211, 0.0
        %v215 = vadd.f32 %v213, %v214
        %216 = vadd.xlane.f32.xlu0 %v215
        %v217 = vpop.xlane.xlu0 %216
        %v218 = vadd.f32 %v208, %v217
        %219 = vst.msk [vmem:[%s186] sm:$0xf] %vm206, %v218
        %p220 = scmp.eq.s32.totalorder %s22, 1
        // Predicated region
        $region33: #{tpu_custom_call.1} parent=23 // pred_check
          %p221 = pneg %p220
        $region34: #{tpu_custom_call.1} parent=23 // pred_check_branch
          %223 = sbr.rel (%p221) target = $region36
        $region35: #{tpu_custom_call.1} parent=23 // pred_region
          %v224 = vld [vmem:[%s182] sm:$0xf]
          %v225 = vmul.f32 %v224, 0.001953125
          %v226 = vld [vmem:[%s186] sm:$0xf]
          %v227 = vmul.f32 %v226, 0.001953125
          %v228 = vmul.f32 %v225, %v225
          %v229 = vsub.f32 %v227, %v228
          %v230 = vmax.f32 %v229, 0.0
          %231 = vst.msk [vmem:[%s182] sm:$0xf] %vm206, %v225
          %v232 = vadd.f32 %v230, 1e-05
          %v233 = vrsqrt.pop %v232
          %234 = vst.msk [vmem:[%s186] sm:$0xf] %vm206, %v233
        $region36: #{tpu_custom_call.1} parent=23 // pred_fallthru
          _
        %p235 = scmp.lt.s32.totalorder %s21, 0
        %s236 = scalar_select %p235, %s21, 0
        %s237 = smul.addr %s236, 4
        %s238 = scalar_lea.vmem %s1, %s237
        %p239 = scmp.lt.s32.totalorder %s21, 0
        %s240 = scalar_select %p239, %s21, 0
        %s241 = smul.addr %s240, 4
        %s242 = scalar_lea.vmem %s2, %s241
        // Predicated region
        $region37: #{tpu_custom_call.1} parent=23 // pred_check
          %p243 = pneg %p75
        $region38: #{tpu_custom_call.1} parent=23 // pred_check_branch
          %245 = sbr.rel (%p243) target = $region40
        $region39: #{tpu_custom_call.1} parent=23 // pred_region
          _
        $region40: #{tpu_custom_call.1} parent=23 // pred_fallthru
          _
        // Predicated region
        $region41: #{tpu_custom_call.1} parent=23 // pred_check
          %p246 = pneg %p101
        $region42: #{tpu_custom_call.1} parent=23 // pred_check_branch
          %248 = sbr.rel (%p246) target = $region44
        $region43: #{tpu_custom_call.1} parent=23 // pred_region
          _
        $region44: #{tpu_custom_call.1} parent=23 // pred_fallthru
          _
        // Predicated region
        $region45: #{tpu_custom_call.1} parent=23 // pred_check
          %p249 = pneg %p75
        $region46: #{tpu_custom_call.1} parent=23 // pred_check_branch
          %251 = sbr.rel (%p249) target = $region48
        $region47: #{tpu_custom_call.1} parent=23 // pred_region
          %p252 = scmp.lt.s32.totalorder %s21, 0
          %s253 = scalar_select %p252, %s21, 0
          %s254 = smul.addr %s253, 4
          %s255 = scalar_lea.vmem %s1, %s254
        $region48: #{tpu_custom_call.1} parent=23 // pred_fallthru
          _
        // Predicated region
        $region49: #{tpu_custom_call.1} parent=23 // pred_check
          %p256 = pneg %p101
        $region50: #{tpu_custom_call.1} parent=23 // pred_check_branch
          %258 = sbr.rel (%p256) target = $region52
        $region51: #{tpu_custom_call.1} parent=23 // pred_region
          %p259 = scmp.lt.s32.totalorder %s21, 0
          %s260 = scalar_select %p259, %s21, 0
          %s261 = smul.addr %s260, 4
          %s262 = scalar_lea.vmem %s2, %s261
        $region52: #{tpu_custom_call.1} parent=23 // pred_fallthru
          _
      $region24: #{tpu_custom_call.1} parent=5 // pred_fallthru
        _
      %p263 = scmp.le.s32.totalorder 2, %s12
      // Predicated region
      $region53: #{tpu_custom_call.1} parent=5 // pred_check
        %p264 = pneg %p263
      $region54: #{tpu_custom_call.1} parent=5 // pred_check_branch
        %266 = sbr.rel (%p264) target = $region56
      $region55: #{tpu_custom_call.1} parent=5 // pred_region
        %s267 = ssub.s32 %s12, 2
      $region56: #{tpu_custom_call.1} parent=5 // pred_fallthru
        _
    $region6: #{tpu_custom_call.1} parent=1 // loop_footer
      %s16 = sadd.s32 1, %s12
    $region7: #{tpu_custom_call.1} parent=1 // loop_footer_branch
      %11 = sbr.rel target = $region3
    $region8: #{tpu_custom_call.1} parent=1 // loop_exit
      _
    %268 = vsyncpa [#allocation3], 1
    %s269 = scalar_lea.sflag [#allocation3], 1
    %270 = vsyncpa %s269, 1

</llo_original>
